<compile_context>
chip_gen: v6e
topology: v6e:2x2x1
jax: 0.10.0
libtpu: 0.0.40
codegen_flags: <defaults>
</compile_context>

<pallas_src>
import functools

import jax
import jax.numpy as jnp
import numpy as np
from jax.experimental import pallas as pl
from jax.experimental.pallas import tpu as pltpu

LANE = 128


def _round_up(n, m):
    return ((n + m - 1) // m) * m


def _chamfer_min_kernel(x_ref, xx_ref, bx_ref, yT_ref, hyy_ref, by_ref,
                        out_ref, acc_ref):
    """Accumulate min_j (0.5*||y_j||^2 - x_i.y_j) over one y chunk.

    Grid = (Nx_pad // tm, Ny_pad // tn); axis 1 (y chunks) is the reduction axis.
    acc_ref is a (tm, 128) VMEM scratch holding a running elementwise min; the
    single cross-lane min + (+||x||^2, clamp) happens only at the last j step.
    """
    j = pl.program_id(1)

    @pl.when(j == 0)
    def _init():
        acc_ref[...] = jnp.full(acc_ref.shape, jnp.inf, acc_ref.dtype)

    x = x_ref[...]                    # (tm, D) f32
    bx = bx_ref[...]                  # (tm, 1) int32

    nc = yT_ref.shape[1] // LANE      # static sub-chunk count inside this y chunk
    for c in range(nc):               # static unroll; slices are free views
        lo = c * LANE
        yT_c = yT_ref[:, lo:lo + LANE]        # (D, 128)  lane-dense
        hyy_c = hyy_ref[:, lo:lo + LANE]      # (1, 128)  0.5*||y||^2
        by_c = by_ref[:, lo:lo + LANE]        # (1, 128)

        xy = jnp.dot(x, yT_c, preferred_element_type=jnp.float32)   # MXU (tm,128)
        t = hyy_c - xy                                               # 0.5||y||^2 - x.y
        t = jnp.where(bx == by_c, t, jnp.inf)                        # batch mask
        acc_ref[...] = jnp.minimum(acc_ref[...], t)                  # VALU running min

    @pl.when(j == pl.num_programs(1) - 1)
    def _finalize():
        rowmin = jnp.min(acc_ref[...], axis=-1, keepdims=True)       # (tm,1), once per i
        # ||x-y||^2 = ||x||^2 + 2*(0.5||y||^2 - x.y); clamp fp cancellation at 0.
        out_ref[...] = jnp.maximum(xx_ref[...] + 2.0 * rowmin, 0.0)


def _nn_sq_dist(x, bx, y, by, *, tm=128, tn=2048):
    """dist[i] = min over j with by[j]==bx[i] of ||x[i]-y[j]||^2 (squared NN distance)."""
    Nx, D = x.shape
    Ny = y.shape[0]
    x = x.astype(jnp.float32)
    y = y.astype(jnp.float32)

    Nx_pad = _round_up(max(Nx, tm), tm)
    tn = max(LANE, min(tn, _round_up(Ny, LANE)))     # shrink chunk for small Ny
    Ny_pad = _round_up(max(Ny, tn), tn)

    # Pad. Padded x rows get batch id -1, padded y rows -2, so padding never
    # matches any valid point (nor other padding).
    xp = jnp.zeros((Nx_pad, D), jnp.float32).at[:Nx].set(x)
    yp = jnp.zeros((Ny_pad, D), jnp.float32).at[:Ny].set(y)
    xx = jnp.sum(xp * xp, axis=-1, keepdims=True)                 # (Nx_pad, 1)
    yT = yp.T                                                     # (D, Ny_pad) lane-dense
    hyy = 0.5 * jnp.sum(yp * yp, axis=-1)[None, :]                # (1, Ny_pad)
    bxp = jnp.full((Nx_pad, 1), -1, jnp.int32).at[:Nx, 0].set(bx.astype(jnp.int32))
    byp = jnp.full((1, Ny_pad), -2, jnp.int32).at[0, :Ny].set(by.astype(jnp.int32))

    grid = (Nx_pad // tm, Ny_pad // tn)
    out = pl.pallas_call(
        _chamfer_min_kernel,
        out_shape=jax.ShapeDtypeStruct((Nx_pad, 1), jnp.float32),
        grid_spec=pltpu.PrefetchScalarGridSpec(
            num_scalar_prefetch=0,
            grid=grid,
            in_specs=[
                pl.BlockSpec((tm, D), lambda i, j: (i, 0)),    # x tile
                pl.BlockSpec((tm, 1), lambda i, j: (i, 0)),    # ||x||^2
                pl.BlockSpec((tm, 1), lambda i, j: (i, 0)),    # batch_x
                pl.BlockSpec((D, tn), lambda i, j: (0, j)),    # y chunk (transposed)
                pl.BlockSpec((1, tn), lambda i, j: (0, j)),    # 0.5*||y||^2
                pl.BlockSpec((1, tn), lambda i, j: (0, j)),    # batch_y
            ],
            out_specs=pl.BlockSpec((tm, 1), lambda i, j: (i, 0)),
            scratch_shapes=[pltpu.VMEM((tm, LANE), jnp.float32)],
        ),
        compiler_params=pltpu.CompilerParams(
            dimension_semantics=("parallel", "arbitrary"),
            vmem_limit_bytes=32 * 1024 * 1024,
        ),
    )(xp, xx, bxp, yT, hyy, byp)
    return out[:Nx, 0]


class StackChamferDistance:
    """JAX/Pallas equivalent of the PyTorch StackChamferDistance module (forward only)."""

    def __call__(self, x, y, batch_x, batch_y, batch_size=None):
        return self.forward(x, y, batch_x, batch_y, batch_size)

    def forward(self, x, y, batch_x, batch_y, batch_size=None):
        # x.view(-1, 1) if x.dim() == 1 (same for y)
        x = x.reshape(-1, 1) if x.ndim == 1 else x
        y = y.reshape(-1, 1) if y.ndim == 1 else y
        batch_x = batch_x.astype(jnp.int32)
        batch_y = batch_y.astype(jnp.int32)

        if batch_size is None:
            # Fallback (host sync; pass batch_size explicitly to keep this jittable).
            batch_size = int(jax.device_get(jnp.max(batch_x))) + 1

        # deg_x / deg_y: per-batch point counts (torch returns int64; int32 here).
        deg_x = jnp.zeros((batch_size,), jnp.int32).at[batch_x].add(1)
        deg_y = jnp.zeros((batch_size,), jnp.int32).at[batch_y].add(1)

        dist_x = _nn_sq_dist(x, batch_x, y, batch_y)
        dist_y = _nn_sq_dist(y, batch_y, x, batch_x)
        return dist_x, dist_y, deg_x, deg_y


def _reference(x, y, batch_x, batch_y):
    """Pure-JAX reference for correctness check."""
    d = jnp.sum((x[:, None, :] - y[None, :, :]) ** 2, axis=-1)
    same = batch_x[:, None] == batch_y[None, :]
    d = jnp.where(same, d, jnp.inf)
    return jnp.min(d, axis=1), jnp.min(d, axis=0)


if __name__ == "__main__":
    key = jax.random.PRNGKey(0)
    k1, k2 = jax.random.split(key, 2)

    # Small deterministic example: 2 stacked point clouds of 3-D points.
    nx0, nx1 = 100, 140          # Nx = 240 points total in x
    ny0, ny1 = 90, 110           # Ny = 200 points total in y
    D = 3

    x = jax.random.normal(k1, (nx0 + nx1, D), jnp.float32)
    y = jax.random.normal(k2, (ny0 + ny1, D), jnp.float32)
    batch_x = jnp.concatenate([jnp.zeros((nx0,), jnp.int32),
                               jnp.ones((nx1,), jnp.int32)])
    batch_y = jnp.concatenate([jnp.zeros((ny0,), jnp.int32),
                               jnp.ones((ny1,), jnp.int32)])

    mod = StackChamferDistance()
    dist_x, dist_y, deg_x, deg_y = mod(x, y, batch_x, batch_y, batch_size=2)
    jax.block_until_ready((dist_x, dist_y, deg_x, deg_y))

    ref_dx, ref_dy = _reference(x, y, batch_x, batch_y)
    assert np.allclose(np.asarray(dist_x), np.asarray(ref_dx), rtol=1e-4, atol=1e-4)
    assert np.allclose(np.asarray(dist_y), np.asarray(ref_dy), rtol=1e-4, atol=1e-4)
    assert np.array_equal(np.asarray(deg_x), np.array([nx0, nx1]))
    assert np.array_equal(np.asarray(deg_y), np.array([ny0, ny1]))

    # Extra check: force multiple y-chunk grid steps (tn=128 -> 2 reduction steps)
    # to exercise the cross-step accumulator path.
    d_small_chunks = _nn_sq_dist(x, batch_x, y, batch_y, tn=128)
    jax.block_until_ready(d_small_chunks)
    assert np.allclose(np.asarray(d_small_chunks), np.asarray(ref_dx),
                       rtol=1e-4, atol=1e-4)

    print("KERNEL_OK")
</pallas_src>

<mosaic_0001>
module attributes {stable_mosaic.version = 11 : i64} {
  func.func @_chamfer_min_kernel(%arg0: i32, %arg1: i32, %arg2: memref<128x3xf32, #tpu.memory_space<vmem>>, %arg3: memref<128x1xf32, #tpu.memory_space<vmem>>, %arg4: memref<128x1xi32, #tpu.memory_space<vmem>>, %arg5: memref<3x256xf32, #tpu.memory_space<vmem>>, %arg6: memref<1x256xf32, #tpu.memory_space<vmem>>, %arg7: memref<1x256xi32, #tpu.memory_space<vmem>>, %arg8: memref<128x1xf32, #tpu.memory_space<vmem>>, %arg9: memref<128x128xf32, #tpu.memory_space<vmem>>) attributes {dimension_semantics = [#tpu.dimension_semantics<parallel>, #tpu.dimension_semantics<arbitrary>], iteration_bounds = array<i64: 2, 1>, scalar_prefetch = 0 : i64, scratch_operands = 1 : i64, tpu.core_type = #tpu.core_type<tc>, window_params = [{transform_indices = @transform_0, window_bounds = array<i64: 128, 3>}, {transform_indices = @transform_1, window_bounds = array<i64: 128, 1>}, {transform_indices = @transform_2, window_bounds = array<i64: 128, 1>}, {transform_indices = @transform_3, window_bounds = array<i64: 3, 256>}, {transform_indices = @transform_4, window_bounds = array<i64: 1, 256>}, {transform_indices = @transform_5, window_bounds = array<i64: 1, 256>}, {transform_indices = @transform_6, window_bounds = array<i64: 128, 1>}]} {
    %c0_i32 = arith.constant 0 : i32
    %0 = arith.cmpi eq, %arg1, %c0_i32 : i32
    %1 = arith.extui %0 : i1 to i32
    %c0_i32_0 = arith.constant 0 : i32
    %2 = arith.cmpi ne, %1, %c0_i32_0 : i32
    scf.if %2 {
      %cst_28 = arith.constant 0x7F800000 : f32
      %36 = vector.broadcast %cst_28 : f32 to vector<128x128xf32>
      %c0_29 = arith.constant 0 : index
      %c0_30 = arith.constant 0 : index
      %37 = vector.load %arg9[%c0_29, %c0_30] : memref<128x128xf32, #tpu.memory_space<vmem>>, vector<128x128xf32>
      tpu.vector_store %arg9[%c0_29, %c0_30], %36 {strides = array<i32>} : memref<128x128xf32, #tpu.memory_space<vmem>>, vector<128x128xf32>,
    } else {
    }
    %c0 = arith.constant 0 : index
    %c0_1 = arith.constant 0 : index
    %3 = vector.load %arg2[%c0, %c0_1] : memref<128x3xf32, #tpu.memory_space<vmem>>, vector<128x3xf32>
    %c0_2 = arith.constant 0 : index
    %c0_3 = arith.constant 0 : index
    %4 = vector.load %arg4[%c0_2, %c0_3] : memref<128x1xi32, #tpu.memory_space<vmem>>, vector<128x1xi32>
    %c0_4 = arith.constant 0 : index
    %c0_5 = arith.constant 0 : index
    %5 = vector.load %arg5[%c0_4, %c0_5] : memref<3x256xf32, #tpu.memory_space<vmem>>, vector<3x128xf32>
    %c0_6 = arith.constant 0 : index
    %c0_7 = arith.constant 0 : index
    %6 = vector.load %arg6[%c0_6, %c0_7] : memref<1x256xf32, #tpu.memory_space<vmem>>, vector<1x128xf32>
    %c0_8 = arith.constant 0 : index
    %c0_9 = arith.constant 0 : index
    %7 = vector.load %arg7[%c0_8, %c0_9] : memref<1x256xi32, #tpu.memory_space<vmem>>, vector<1x128xi32>
    %cst = arith.constant dense<0.000000e+00> : vector<128x128xf32>
    %8 = tpu.matmul %3, %5, %cst {dimension_numbers = #tpu.dot_dimension_numbers<[1], [0], [0], [1], [0, 0, 1, 1], [], []>} : vector<128x3xf32>, vector<3x128xf32>, vector<128x128xf32> -> vector<128x128xf32>
    %9 = vector.broadcast %6 : vector<1x128xf32> to vector<128x128xf32>
    %10 = arith.subf %9, %8 : vector<128x128xf32>
    %11 = vector.broadcast %4 : vector<128x1xi32> to vector<128x128xi32>
    %12 = vector.broadcast %7 : vector<1x128xi32> to vector<128x128xi32>
    %13 = arith.cmpi eq, %11, %12 : vector<128x128xi32>
    %cst_10 = arith.constant 0x7F800000 : f32
    %14 = vector.broadcast %cst_10 : f32 to vector<128x128xf32>
    %15 = arith.select %13, %10, %14 : vector<128x128xi1>, vector<128x128xf32>
    %c0_11 = arith.constant 0 : index
    %c0_12 = arith.constant 0 : index
    %16 = vector.load %arg9[%c0_11, %c0_12] : memref<128x128xf32, #tpu.memory_space<vmem>>, vector<128x128xf32>
    %17 = arith.minimumf %16, %15 : vector<128x128xf32>
    %c0_13 = arith.constant 0 : index
    %c0_14 = arith.constant 0 : index
    %18 = vector.load %arg9[%c0_13, %c0_14] : memref<128x128xf32, #tpu.memory_space<vmem>>, vector<128x128xf32>
    tpu.vector_store %arg9[%c0_13, %c0_14], %17 {strides = array<i32>} : memref<128x128xf32, #tpu.memory_space<vmem>>, vector<128x128xf32>,
    %c0_15 = arith.constant 0 : index
    %c128 = arith.constant 128 : index
    %19 = vector.load %arg5[%c0_15, %c128] : memref<3x256xf32, #tpu.memory_space<vmem>>, vector<3x128xf32>
    %c0_16 = arith.constant 0 : index
    %c128_17 = arith.constant 128 : index
    %20 = vector.load %arg6[%c0_16, %c128_17] : memref<1x256xf32, #tpu.memory_space<vmem>>, vector<1x128xf32>
    %c0_18 = arith.constant 0 : index
    %c128_19 = arith.constant 128 : index
    %21 = vector.load %arg7[%c0_18, %c128_19] : memref<1x256xi32, #tpu.memory_space<vmem>>, vector<1x128xi32>
    %cst_20 = arith.constant dense<0.000000e+00> : vector<128x128xf32>
    %22 = tpu.matmul %3, %19, %cst_20 {dimension_numbers = #tpu.dot_dimension_numbers<[1], [0], [0], [1], [0, 0, 1, 1], [], []>} : vector<128x3xf32>, vector<3x128xf32>, vector<128x128xf32> -> vector<128x128xf32>
    %23 = vector.broadcast %20 : vector<1x128xf32> to vector<128x128xf32>
    %24 = arith.subf %23, %22 : vector<128x128xf32>
    %25 = vector.broadcast %4 : vector<128x1xi32> to vector<128x128xi32>
    %26 = vector.broadcast %21 : vector<1x128xi32> to vector<128x128xi32>
    %27 = arith.cmpi eq, %25, %26 : vector<128x128xi32>
    %cst_21 = arith.constant 0x7F800000 : f32
    %28 = vector.broadcast %cst_21 : f32 to vector<128x128xf32>
    %29 = arith.select %27, %24, %28 : vector<128x128xi1>, vector<128x128xf32>
    %c0_22 = arith.constant 0 : index
    %c0_23 = arith.constant 0 : index
    %30 = vector.load %arg9[%c0_22, %c0_23] : memref<128x128xf32, #tpu.memory_space<vmem>>, vector<128x128xf32>
    %31 = arith.minimumf %30, %29 : vector<128x128xf32>
    %c0_24 = arith.constant 0 : index
    %c0_25 = arith.constant 0 : index
    %32 = vector.load %arg9[%c0_24, %c0_25] : memref<128x128xf32, #tpu.memory_space<vmem>>, vector<128x128xf32>
    tpu.vector_store %arg9[%c0_24, %c0_25], %31 {strides = array<i32>} : memref<128x128xf32, #tpu.memory_space<vmem>>, vector<128x128xf32>,
    %c0_i32_26 = arith.constant 0 : i32
    %33 = arith.cmpi eq, %arg1, %c0_i32_26 : i32
    %34 = arith.extui %33 : i1 to i32
    %c0_i32_27 = arith.constant 0 : i32
    %35 = arith.cmpi ne, %34, %c0_i32_27 : i32
    scf.if %35 {
      %c0_28 = arith.constant 0 : index
      %c0_29 = arith.constant 0 : index
      %36 = vector.load %arg9[%c0_28, %c0_29] : memref<128x128xf32, #tpu.memory_space<vmem>>, vector<128x128xf32>
      %cst_30 = arith.constant dense<0x7F800000> : vector<128xf32>
      %37 = vector.multi_reduction <minimumf>, %36, %cst_30 [1] : vector<128x128xf32> to vector<128xf32>
      %38 = vector.shape_cast %37 : vector<128xf32> to vector<128x1xf32>
      %c0_31 = arith.constant 0 : index
      %c0_32 = arith.constant 0 : index
      %39 = vector.load %arg3[%c0_31, %c0_32] : memref<128x1xf32, #tpu.memory_space<vmem>>, vector<128x1xf32>
      %cst_33 = arith.constant 2.000000e+00 : f32
      %40 = vector.broadcast %cst_33 : f32 to vector<128x1xf32>
      %41 = arith.mulf %40, %38 : vector<128x1xf32>
      %42 = arith.addf %39, %41 : vector<128x1xf32>
      %cst_34 = arith.constant 0.000000e+00 : f32
      %43 = vector.broadcast %cst_34 : f32 to vector<128x1xf32>
      %44 = arith.maximumf %42, %43 : vector<128x1xf32>
      %c0_35 = arith.constant 0 : index
      %c0_36 = arith.constant 0 : index
      %45 = vector.load %arg8[%c0_35, %c0_36] : memref<128x1xf32, #tpu.memory_space<vmem>>, vector<128x1xf32>
      tpu.vector_store %arg8[%c0_35, %c0_36], %44 {strides = array<i32>} : memref<128x1xf32, #tpu.memory_space<vmem>>, vector<128x1xf32>,
    } else {
    }
    return
  }
  func.func @transform_0(%arg0: i32, %arg1: i32) -> (i32, i32) {
    %c0_i32 = arith.constant 0 : i32
    %c0_i32_0 = arith.constant 0 : i32
    return %arg0, %c0_i32 : i32, i32
  }
  func.func @transform_1(%arg0: i32, %arg1: i32) -> (i32, i32) {
    %c0_i32 = arith.constant 0 : i32
    %c0_i32_0 = arith.constant 0 : i32
    return %arg0, %c0_i32 : i32, i32
  }
  func.func @transform_2(%arg0: i32, %arg1: i32) -> (i32, i32) {
    %c0_i32 = arith.constant 0 : i32
    %c0_i32_0 = arith.constant 0 : i32
    return %arg0, %c0_i32 : i32, i32
  }
  func.func @transform_3(%arg0: i32, %arg1: i32) -> (i32, i32) {
    %c0_i32 = arith.constant 0 : i32
    %c0_i32_0 = arith.constant 0 : i32
    return %c0_i32, %arg1 : i32, i32
  }
  func.func @transform_4(%arg0: i32, %arg1: i32) -> (i32, i32) {
    %c0_i32 = arith.constant 0 : i32
    %c0_i32_0 = arith.constant 0 : i32
    return %c0_i32, %arg1 : i32, i32
  }
  func.func @transform_5(%arg0: i32, %arg1: i32) -> (i32, i32) {
    %c0_i32 = arith.constant 0 : i32
    %c0_i32_0 = arith.constant 0 : i32
    return %c0_i32, %arg1 : i32, i32
  }
  func.func @transform_6(%arg0: i32, %arg1: i32) -> (i32, i32) {
    %c0_i32 = arith.constant 0 : i32
    %c0_i32_0 = arith.constant 0 : i32
    return %arg0, %c0_i32 : i32, i32
  }
}

</mosaic_0001>

<llo_original>
// kernel: tpu_custom_call.1
$region0: #{tpu_custom_call.1}
  #allocation0 [shape = 'u32[]', space=smem, size = 0x4, offset = 0x4, fixed_abs, tag = 'smem constant byte address 0x4 - core index']
  #allocation1 [shape = 'u32[144,128]{1,0:T(1,128)}', space=vmem, size = 0x12000, scoped, tag = 'internal scratch']
  #allocation2 [shape = 'f32[128,128]{1,0:T(8,128)}', space=vmem, size = 0x10000, scoped, tag = 'scratch operand']
  %s0 = inlined_call_operand.vmem [shape: f32[256,3], index: 0, kind: input, shape index: {}]
  %s1 = inlined_call_operand.vmem [shape: f32[256,1], index: 1, kind: input, shape index: {}]
  %s2 = inlined_call_operand.vmem [shape: s32[256,1], index: 2, kind: input, shape index: {}]
  %s3 = inlined_call_operand.vmem [shape: f32[3,256], index: 3, kind: input, shape index: {}]
  %s4 = inlined_call_operand.vmem [shape: f32[1,256], index: 4, kind: input, shape index: {}]
  %s5 = inlined_call_operand.vmem [shape: s32[1,256], index: 5, kind: input, shape index: {}]
  %s6 = inlined_call_operand.vmem [shape: f32[256,1], index: 6, kind: output, shape index: {}]
  %s7 = sld [smem:[#allocation0]]
  $region65: #{tpu_custom_call.1} parent=0
    _
  %s9 = ssub.s32 1, %s7
  %s10 = scalar_select 0, %s9, %s7
  loop: start=0, step=1, limit=4
  $region2: #{tpu_custom_call.1} parent=0 // loop_pre_header
    _
  $region3: #{tpu_custom_call.1} parent=0 // loop_header
    %s12 = sphi 0, %s16
    %p13 = scmp.ge.s32.totalorder %s12, 4
    %s19 = sphi 0, %s31
    %s20 = sphi 0, %s27
    %s21 = sphi 0, %s19
    %s22 = sphi 0, %s20
    %s23 = sphi 0, %s21
    %s24 = sphi 0, %s22
    %s34 = sphi 0, %s36
    %s37 = sphi 0, %s34
    %s38 = sphi 0, %s37
    %s54 = sphi 0, %s38
    %s60 = sphi 0, %s62
    %s63 = sphi 0, %s60
    %s64 = sphi 0, %s63
    %s80 = sphi 0, %s64
    %s86 = sphi 0, %s88
    %s89 = sphi 0, %s86
    %s90 = sphi 0, %s89
    %s106 = sphi 0, %s90
    %s112 = sphi 0, %s114
    %s115 = sphi 0, %s112
    %s116 = sphi 0, %s115
    %s132 = sphi 0, %s116
    %s138 = sphi 0, %s140
    %s141 = sphi 0, %s138
    %s142 = sphi 0, %s141
    %s158 = sphi 0, %s142
    %s164 = sphi 0, %s166
    %s167 = sphi 0, %s164
    %s168 = sphi 0, %s167
    %s184 = sphi 0, %s168
    %s190 = sphi 0, %s192
    %s193 = sphi 0, %s190
    %s194 = sphi 0, %s193
    %s210 = sphi 0, %s194
  $region4: #{tpu_custom_call.1} parent=0 // loop_header_branch
    %15 = sbr.rel (%p13) target = $region8
  $region5: #{tpu_custom_call.1} parent=0 // loop_body
    %s17 = ssub.s32 %s12, 1
    %s18 = ssub.s32 %s12, 2
    %s25 = sadd.s32 1, %s20
    %p26 = scmp.ge.s32.totalorder %s25, 1
    %s27 = scalar_select %p26, 0, %s25
    %s28 = sadd.s32 1, %s19
    %s29 = scalar_select %p26, %s28, %s19
    %p30 = scmp.ge.s32.totalorder %s29, 2
    %s31 = scalar_select %p30, 0, %s29
    %s32 = ssub.s32 %s19, %s31
    %p33 = scmp.eq.s32.totalorder %s32, 0
    %s35 = sadd.s32 %s34, 1
    %s36 = scalar_select %p33, %s34, %s35
    %p39 = pneg %p33
    %p40 = scmp.eq.s32.totalorder %s12, 1
    %p41 = por %p39, %p40
    %p42 = scmp.ne.s32.totalorder %s34, %s37
    %p43 = scmp.eq.s32.totalorder %s12, 0
    %p44 = por %p42, %p43
    %p45 = scmp.ne.s32.totalorder %s34, %s37
    %p46 = scmp.eq.s32.totalorder %s17, 1
    %p47 = por %p45, %p46
    %p48 = scmp.ne.s32.totalorder %s37, %s38
    %p49 = scmp.eq.s32.totalorder %s17, 0
    %p50 = por %p48, %p49
    %p51 = scmp.ne.s32.totalorder %s37, %s38
    %p52 = scmp.eq.s32.totalorder %s18, 1
    %p53 = por %p51, %p52
    %p55 = scmp.ne.s32.totalorder %s38, %s54
    %p56 = scmp.eq.s32.totalorder %s18, 0
    %p57 = por %p55, %p56
    %s58 = ssub.s32 %s19, %s31
    %p59 = scmp.eq.s32.totalorder %s58, 0
    %s61 = sadd.s32 %s60, 1
    %s62 = scalar_select %p59, %s60, %s61
    %p65 = pneg %p59
    %p66 = scmp.eq.s32.totalorder %s12, 1
    %p67 = por %p65, %p66
    %p68 = scmp.ne.s32.totalorder %s60, %s63
    %p69 = scmp.eq.s32.totalorder %s12, 0
    %p70 = por %p68, %p69
    %p71 = scmp.ne.s32.totalorder %s60, %s63
    %p72 = scmp.eq.s32.totalorder %s17, 1
    %p73 = por %p71, %p72
    %p74 = scmp.ne.s32.totalorder %s63, %s64
    %p75 = scmp.eq.s32.totalorder %s17, 0
    %p76 = por %p74, %p75
    %p77 = scmp.ne.s32.totalorder %s63, %s64
    %p78 = scmp.eq.s32.totalorder %s18, 1
    %p79 = por %p77, %p78
    %p81 = scmp.ne.s32.totalorder %s64, %s80
    %p82 = scmp.eq.s32.totalorder %s18, 0
    %p83 = por %p81, %p82
    %s84 = ssub.s32 %s19, %s31
    %p85 = scmp.eq.s32.totalorder %s84, 0
    %s87 = sadd.s32 %s86, 1
    %s88 = scalar_select %p85, %s86, %s87
    %p91 = pneg %p85
    %p92 = scmp.eq.s32.totalorder %s12, 1
    %p93 = por %p91, %p92
    %p94 = scmp.ne.s32.totalorder %s86, %s89
    %p95 = scmp.eq.s32.totalorder %s12, 0
    %p96 = por %p94, %p95
    %p97 = scmp.ne.s32.totalorder %s86, %s89
    %p98 = scmp.eq.s32.totalorder %s17, 1
    %p99 = por %p97, %p98
    %p100 = scmp.ne.s32.totalorder %s89, %s90
    %p101 = scmp.eq.s32.totalorder %s17, 0
    %p102 = por %p100, %p101
    %p103 = scmp.ne.s32.totalorder %s89, %s90
    %p104 = scmp.eq.s32.totalorder %s18, 1
    %p105 = por %p103, %p104
    %p107 = scmp.ne.s32.totalorder %s90, %s106
    %p108 = scmp.eq.s32.totalorder %s18, 0
    %p109 = por %p107, %p108
    %s110 = ssub.s32 %s20, %s27
    %p111 = scmp.eq.s32.totalorder %s110, 0
    %s113 = sadd.s32 %s112, 1
    %s114 = scalar_select %p111, %s112, %s113
    %p117 = pneg %p111
    %p118 = scmp.eq.s32.totalorder %s12, 1
    %p119 = por %p117, %p118
    %p120 = scmp.ne.s32.totalorder %s112, %s115
    %p121 = scmp.eq.s32.totalorder %s12, 0
    %p122 = por %p120, %p121
    %p123 = scmp.ne.s32.totalorder %s112, %s115
    %p124 = scmp.eq.s32.totalorder %s17, 1
    %p125 = por %p123, %p124
    %p126 = scmp.ne.s32.totalorder %s115, %s116
    %p127 = scmp.eq.s32.totalorder %s17, 0
    %p128 = por %p126, %p127
    %p129 = scmp.ne.s32.totalorder %s115, %s116
    %p130 = scmp.eq.s32.totalorder %s18, 1
    %p131 = por %p129, %p130
    %p133 = scmp.ne.s32.totalorder %s116, %s132
    %p134 = scmp.eq.s32.totalorder %s18, 0
    %p135 = por %p133, %p134
    %s136 = ssub.s32 %s20, %s27
    %p137 = scmp.eq.s32.totalorder %s136, 0
    %s139 = sadd.s32 %s138, 1
    %s140 = scalar_select %p137, %s138, %s139
    %p143 = pneg %p137
    %p144 = scmp.eq.s32.totalorder %s12, 1
    %p145 = por %p143, %p144
    %p146 = scmp.ne.s32.totalorder %s138, %s141
    %p147 = scmp.eq.s32.totalorder %s12, 0
    %p148 = por %p146, %p147
    %p149 = scmp.ne.s32.totalorder %s138, %s141
    %p150 = scmp.eq.s32.totalorder %s17, 1
    %p151 = por %p149, %p150
    %p152 = scmp.ne.s32.totalorder %s141, %s142
    %p153 = scmp.eq.s32.totalorder %s17, 0
    %p154 = por %p152, %p153
    %p155 = scmp.ne.s32.totalorder %s141, %s142
    %p156 = scmp.eq.s32.totalorder %s18, 1
    %p157 = por %p155, %p156
    %p159 = scmp.ne.s32.totalorder %s142, %s158
    %p160 = scmp.eq.s32.totalorder %s18, 0
    %p161 = por %p159, %p160
    %s162 = ssub.s32 %s20, %s27
    %p163 = scmp.eq.s32.totalorder %s162, 0
    %s165 = sadd.s32 %s164, 1
    %s166 = scalar_select %p163, %s164, %s165
    %p169 = pneg %p163
    %p170 = scmp.eq.s32.totalorder %s12, 1
    %p171 = por %p169, %p170
    %p172 = scmp.ne.s32.totalorder %s164, %s167
    %p173 = scmp.eq.s32.totalorder %s12, 0
    %p174 = por %p172, %p173
    %p175 = scmp.ne.s32.totalorder %s164, %s167
    %p176 = scmp.eq.s32.totalorder %s17, 1
    %p177 = por %p175, %p176
    %p178 = scmp.ne.s32.totalorder %s167, %s168
    %p179 = scmp.eq.s32.totalorder %s17, 0
    %p180 = por %p178, %p179
    %p181 = scmp.ne.s32.totalorder %s167, %s168
    %p182 = scmp.eq.s32.totalorder %s18, 1
    %p183 = por %p181, %p182
    %p185 = scmp.ne.s32.totalorder %s168, %s184
    %p186 = scmp.eq.s32.totalorder %s18, 0
    %p187 = por %p185, %p186
    %s188 = ssub.s32 %s19, %s31
    %p189 = scmp.eq.s32.totalorder %s188, 0
    %s191 = sadd.s32 %s190, 1
    %s192 = scalar_select %p189, %s190, %s191
    %p195 = pneg %p189
    %p196 = scmp.eq.s32.totalorder %s12, 1
    %p197 = por %p195, %p196
    %p198 = scmp.ne.s32.totalorder %s190, %s193
    %p199 = scmp.eq.s32.totalorder %s12, 0
    %p200 = por %p198, %p199
    %p201 = scmp.ne.s32.totalorder %s190, %s193
    %p202 = scmp.eq.s32.totalorder %s17, 1
    %p203 = por %p201, %p202
    %p204 = scmp.ne.s32.totalorder %s193, %s194
    %p205 = scmp.eq.s32.totalorder %s17, 0
    %p206 = por %p204, %p205
    %p207 = scmp.ne.s32.totalorder %s193, %s194
    %p208 = scmp.eq.s32.totalorder %s18, 1
    %p209 = por %p207, %p208
    %p211 = scmp.ne.s32.totalorder %s194, %s210
    %p212 = scmp.eq.s32.totalorder %s18, 0
    %p213 = por %p211, %p212
    %p214 = scmp.le.s32.totalorder 1, %s12
    %p215 = scmp.lt.s32.totalorder %s12, 3
    %p216 = pnand %p214, %p215
    %p217 = pneg %p216
    // Predicated region
    $region9: #{tpu_custom_call.1} parent=5 // pred_check
      _
    $region10: #{tpu_custom_call.1} parent=5 // pred_check_branch
      %219 = sbr.rel (%p216) target = $region12
    $region11: #{tpu_custom_call.1} parent=5 // pred_region
      %s220 = ssub.s32 %s12, 1
      // Predicated region
      $region13: #{tpu_custom_call.1} parent=11 // pred_check
        %p221 = pneg %p128
      $region14: #{tpu_custom_call.1} parent=11 // pred_check_branch
        %223 = sbr.rel (%p221) target = $region16
      $region15: #{tpu_custom_call.1} parent=11 // pred_region
        %s224 = smul.u32 2, %s22
        %p225 = scmp.lt.s32.totalorder %s224, 1
        %s226 = scalar_select %p225, %s224, 1
        %s227 = smul.addr %s226, 4
        %s228 = scalar_lea.vmem %s3, %s227
        %s229 = smul.u32 2, %s22
      $region16: #{tpu_custom_call.1} parent=11 // pred_fallthru
        _
      // Predicated region
      $region17: #{tpu_custom_call.1} parent=11 // pred_check
        %p230 = pneg %p154
      $region18: #{tpu_custom_call.1} parent=11 // pred_check_branch
        %232 = sbr.rel (%p230) target = $region20
      $region19: #{tpu_custom_call.1} parent=11 // pred_region
        %s233 = smul.u32 2, %s22
        %p234 = scmp.lt.s32.totalorder %s233, 1
        %s235 = scalar_select %p234, %s233, 1
        %s236 = scalar_lea.vmem %s4, %s235
        %s237 = smul.u32 2, %s22
      $region20: #{tpu_custom_call.1} parent=11 // pred_fallthru
        _
      // Predicated region
      $region21: #{tpu_custom_call.1} parent=11 // pred_check
        %p238 = pneg %p180
      $region22: #{tpu_custom_call.1} parent=11 // pred_check_branch
        %240 = sbr.rel (%p238) target = $region24
      $region23: #{tpu_custom_call.1} parent=11 // pred_region
        %s241 = smul.u32 2, %s22
        %p242 = scmp.lt.s32.totalorder %s241, 1
        %s243 = scalar_select %p242, %s241, 1
        %s244 = scalar_lea.vmem %s5, %s243
        %s245 = smul.u32 2, %s22
      $region24: #{tpu_custom_call.1} parent=11 // pred_fallthru
        _
    $region12: #{tpu_custom_call.1} parent=5 // pred_fallthru
      _
    %p246 = scmp.lt.s32.totalorder %s12, 2
    // Predicated region
    $region25: #{tpu_custom_call.1} parent=5 // pred_check
      %p247 = pneg %p246
    $region26: #{tpu_custom_call.1} parent=5 // pred_check_branch
      %249 = sbr.rel (%p247) target = $region28
    $region27: #{tpu_custom_call.1} parent=5 // pred_region
      // Predicated region
      $region29: #{tpu_custom_call.1} parent=27 // pred_check
        %p250 = pneg %p44
      $region30: #{tpu_custom_call.1} parent=27 // pred_check_branch
        %252 = sbr.rel (%p250) target = $region32
      $region31: #{tpu_custom_call.1} parent=27 // pred_region
        %s253 = smul.u32 16, %s19
        %p254 = scmp.lt.s32.totalorder %s253, 31
        %s255 = scalar_select %p254, %s253, 31
        %s256 = smul.addr %s255, 8
        %s257 = scalar_lea.vmem %s0, %s256
        %s258 = smul.u32 16, %s19
      $region32: #{tpu_custom_call.1} parent=27 // pred_fallthru
        _
      // Predicated region
      $region33: #{tpu_custom_call.1} parent=27 // pred_check
        %p259 = pneg %p70
      $region34: #{tpu_custom_call.1} parent=27 // pred_check_branch
        %261 = sbr.rel (%p259) target = $region36
      $region35: #{tpu_custom_call.1} parent=27 // pred_region
        %s262 = smul.u32 16, %s19
        %p263 = scmp.lt.s32.totalorder %s262, 31
        %s264 = scalar_select %p263, %s262, 31
        %s265 = smul.addr %s264, 8
        %s266 = scalar_lea.vmem %s1, %s265
        %s267 = smul.u32 16, %s19
      $region36: #{tpu_custom_call.1} parent=27 // pred_fallthru
        _
      // Predicated region
      $region37: #{tpu_custom_call.1} parent=27 // pred_check
        %p268 = pneg %p96
      $region38: #{tpu_custom_call.1} parent=27 // pred_check_branch
        %270 = sbr.rel (%p268) target = $region40
      $region39: #{tpu_custom_call.1} parent=27 // pred_region
        %s271 = smul.u32 16, %s19
        %p272 = scmp.lt.s32.totalorder %s271, 31
        %s273 = scalar_select %p272, %s271, 31
        %s274 = smul.addr %s273, 8
        %s275 = scalar_lea.vmem %s2, %s274
        %s276 = smul.u32 16, %s19
      $region40: #{tpu_custom_call.1} parent=27 // pred_fallthru
        _
    $region28: #{tpu_custom_call.1} parent=5 // pred_fallthru
      _
    %p277 = scmp.le.s32.totalorder 1, %s12
    %p278 = scmp.lt.s32.totalorder %s12, 3
    %p279 = pnand %p277, %p278
    %p280 = pneg %p279
    // Predicated region
    $region41: #{tpu_custom_call.1} parent=5 // pred_check
      _
    $region42: #{tpu_custom_call.1} parent=5 // pred_check_branch
      %282 = sbr.rel (%p279) target = $region44
    $region43: #{tpu_custom_call.1} parent=5 // pred_region
      %s283 = ssub.s32 %s12, 1
      %s284 = smul.u32 16, %s21
      %p285 = scmp.lt.s32.totalorder %s284, 31
      %s286 = scalar_select %p285, %s284, 31
      %s287 = smul.addr %s286, 8
      %s288 = scalar_lea.vmem %s0, %s287
      %p289 = pneg %p50
      %p290 = pneg %p47
      %s291 = smul.u32 16, %s21
      %p292 = scmp.lt.s32.totalorder %s291, 31
      %s293 = scalar_select %p292, %s291, 31
      %s294 = smul.addr %s293, 8
      %s295 = scalar_lea.vmem %s1, %s294
      %p296 = pneg %p76
      %p297 = pneg %p73
      %s298 = smul.u32 16, %s21
      %p299 = scmp.lt.s32.totalorder %s298, 31
      %s300 = scalar_select %p299, %s298, 31
      %s301 = smul.addr %s300, 8
      %s302 = scalar_lea.vmem %s2, %s301
      %p303 = pneg %p102
      %p304 = pneg %p99
      %s305 = smul.u32 2, %s22
      %p306 = scmp.lt.s32.totalorder %s305, 1
      %s307 = scalar_select %p306, %s305, 1
      %s308 = smul.addr %s307, 4
      %s309 = scalar_lea.vmem %s3, %s308
      %p310 = pneg %p128
      %p311 = pneg %p125
      %s312 = smul.u32 2, %s22
      %p313 = scmp.lt.s32.totalorder %s312, 1
      %s314 = scalar_select %p313, %s312, 1
      %s315 = scalar_lea.vmem %s4, %s314
      %p316 = pneg %p154
      %p317 = pneg %p151
      %s318 = smul.u32 2, %s22
      %p319 = scmp.lt.s32.totalorder %s318, 1
      %s320 = scalar_select %p319, %s318, 1
      %s321 = scalar_lea.vmem %s5, %s320
      %p322 = pneg %p180
      %p323 = pneg %p177
      %p324 = pneg %p206
      %p325 = pneg %p203
      %s326 = smul.u32 16, %s21
      %p327 = scmp.lt.s32.totalorder %s326, 31
      %s328 = scalar_select %p327, %s326, 31
      %s329 = smul.addr %s328, 8
      %s330 = scalar_lea.vmem %s6, %s329
      %s331 = smul.u32 16, %s21
      %p332 = scmp.lt.s32.totalorder %s331, 31
      %s333 = scalar_select %p332, %s331, 31
      %s334 = smul.addr %s333, 8
      %s335 = scalar_lea.vmem %s0, %s334
      %s336 = smul.u32 16, %s21
      %s337 = smul.u32 16, %s21
      %p338 = scmp.lt.s32.totalorder %s337, 31
      %s339 = scalar_select %p338, %s337, 31
      %s340 = smul.addr %s339, 8
      %s341 = scalar_lea.vmem %s1, %s340
      %s342 = smul.u32 16, %s21
      %s343 = smul.u32 16, %s21
      %p344 = scmp.lt.s32.totalorder %s343, 31
      %s345 = scalar_select %p344, %s343, 31
      %s346 = smul.addr %s345, 8
      %s347 = scalar_lea.vmem %s2, %s346
      %s348 = smul.u32 16, %s21
      %s349 = smul.u32 2, %s22
      %p350 = scmp.lt.s32.totalorder %s349, 1
      %s351 = scalar_select %p350, %s349, 1
      %s352 = smul.addr %s351, 4
      %s353 = scalar_lea.vmem %s3, %s352
      %s354 = smul.u32 2, %s22
      %s355 = smul.u32 2, %s22
      %p356 = scmp.lt.s32.totalorder %s355, 1
      %s357 = scalar_select %p356, %s355, 1
      %s358 = scalar_lea.vmem %s4, %s357
      %s359 = smul.u32 2, %s22
      %s360 = smul.u32 2, %s22
      %p361 = scmp.lt.s32.totalorder %s360, 1
      %s362 = scalar_select %p361, %s360, 1
      %s363 = scalar_lea.vmem %s5, %s362
      %s364 = smul.u32 2, %s22
      %s365 = smul.u32 16, %s21
      %p366 = scmp.lt.s32.totalorder %s365, 31
      %s367 = scalar_select %p366, %s365, 31
      %s368 = smul.addr %s367, 8
      %s369 = scalar_lea.vmem %s6, %s368
      %s370 = smul.u32 16, %s21
      %p371 = scmp.eq.s32.totalorder %s22, 0
      // Predicated region
      $region45: #{tpu_custom_call.1} parent=43 // pred_check
        %p372 = pneg %p371
      $region46: #{tpu_custom_call.1} parent=43 // pred_check_branch
        %374 = sbr.rel (%p372) target = $region48
      $region47: #{tpu_custom_call.1} parent=43 // pred_region
        %375 = vst [vmem:[#allocation2] sm:$0xff] inf
        %376 = vst [vmem:[#allocation2 + $0x8] sm:$0xff] inf
        %377 = vst [vmem:[#allocation2 + $0x10] sm:$0xff] inf
        %378 = vst [vmem:[#allocation2 + $0x18] sm:$0xff] inf
        %379 = vst [vmem:[#allocation2 + $0x20] sm:$0xff] inf
        %380 = vst [vmem:[#allocation2 + $0x28] sm:$0xff] inf
        %381 = vst [vmem:[#allocation2 + $0x30] sm:$0xff] inf
        %382 = vst [vmem:[#allocation2 + $0x38] sm:$0xff] inf
        %383 = vst [vmem:[#allocation2 + $0x40] sm:$0xff] inf
        %384 = vst [vmem:[#allocation2 + $0x48] sm:$0xff] inf
        %385 = vst [vmem:[#allocation2 + $0x50] sm:$0xff] inf
        %386 = vst [vmem:[#allocation2 + $0x58] sm:$0xff] inf
        %387 = vst [vmem:[#allocation2 + $0x60] sm:$0xff] inf
        %388 = vst [vmem:[#allocation2 + $0x68] sm:$0xff] inf
        %389 = vst [vmem:[#allocation2 + $0x70] sm:$0xff] inf
        %390 = vst [vmem:[#allocation2 + $0x78] sm:$0xff] inf
      $region48: #{tpu_custom_call.1} parent=43 // pred_fallthru
        _
      %v391 = vld [vmem:[%s335] sm:$0xff]
      %v392 = vld [vmem:[%s335 + $0x8] sm:$0xff]
      %v393 = vld [vmem:[%s335 + $0x10] sm:$0xff]
      %v394 = vld [vmem:[%s335 + $0x18] sm:$0xff]
      %v395 = vld [vmem:[%s335 + $0x20] sm:$0xff]
      %v396 = vld [vmem:[%s335 + $0x28] sm:$0xff]
      %v397 = vld [vmem:[%s335 + $0x30] sm:$0xff]
      %v398 = vld [vmem:[%s335 + $0x38] sm:$0xff]
      %v399 = vld [vmem:[%s335 + $0x40] sm:$0xff]
      %v400 = vld [vmem:[%s335 + $0x48] sm:$0xff]
      %v401 = vld [vmem:[%s335 + $0x50] sm:$0xff]
      %v402 = vld [vmem:[%s335 + $0x58] sm:$0xff]
      %v403 = vld [vmem:[%s335 + $0x60] sm:$0xff]
      %v404 = vld [vmem:[%s335 + $0x68] sm:$0xff]
      %v405 = vld [vmem:[%s335 + $0x70] sm:$0xff]
      %v406 = vld [vmem:[%s335 + $0x78] sm:$0xff]
      %v407 = vld [vmem:[%s347] sm:$0xff]
      %v408 = vld [vmem:[%s347 + $0x8] sm:$0xff]
      %v409 = vld [vmem:[%s347 + $0x10] sm:$0xff]
      %v410 = vld [vmem:[%s347 + $0x18] sm:$0xff]
      %v411 = vld [vmem:[%s347 + $0x20] sm:$0xff]
      %v412 = vld [vmem:[%s347 + $0x28] sm:$0xff]
      %v413 = vld [vmem:[%s347 + $0x30] sm:$0xff]
      %v414 = vld [vmem:[%s347 + $0x38] sm:$0xff]
      %v415 = vld [vmem:[%s347 + $0x40] sm:$0xff]
      %v416 = vld [vmem:[%s347 + $0x48] sm:$0xff]
      %v417 = vld [vmem:[%s347 + $0x50] sm:$0xff]
      %v418 = vld [vmem:[%s347 + $0x58] sm:$0xff]
      %v419 = vld [vmem:[%s347 + $0x60] sm:$0xff]
      %v420 = vld [vmem:[%s347 + $0x68] sm:$0xff]
      %v421 = vld [vmem:[%s347 + $0x70] sm:$0xff]
      %v422 = vld [vmem:[%s347 + $0x78] sm:$0xff]
      %v423 = vld [vmem:[%s353] sm:$0x7]
      %v424 = vld [vmem:[%s358] sm:$0x1]
      %v425 = vld [vmem:[%s363] sm:$0x1]
      %vm426 = vcmask 23552
      %v428 = vsel %vm426, %v391, 0
      %v431 = vsel %vm426, %v392, 0
      %v434 = vsel %vm426, %v393, 0
      %v437 = vsel %vm426, %v394, 0
      %v440 = vsel %vm426, %v395, 0
      %v443 = vsel %vm426, %v396, 0
      %v446 = vsel %vm426, %v397, 0
      %v449 = vsel %vm426, %v398, 0
      %v452 = vsel %vm426, %v399, 0
      %v455 = vsel %vm426, %v400, 0
      %v458 = vsel %vm426, %v401, 0
      %v461 = vsel %vm426, %v402, 0
      %v464 = vsel %vm426, %v403, 0
      %v467 = vsel %vm426, %v404, 0
      %v470 = vsel %vm426, %v405, 0
      %v473 = vsel %vm426, %v406, 0
      %vm475 = vcmask 1042432
      %v477 = vsel %vm475, %v423, 0
      %479 = vmatprep.subr.mxu0 0.0
      %480 = vmatpush1.msra.mxu0 0.0
      %481 = vmatprep.subr.mxu0 0.0
      %482 = vmatpush1.msra.mxu0 0.0
      %483 = vmatprep.subr.mxu0 0.0
      %484 = vmatpush1.msra.mxu0 0.0
      %485 = vmatprep.subr.mxu0 0.0
      %486 = vmatpush1.msra.mxu0 0.0
      %487 = vmatprep.subr.mxu0 0.0
      %488 = vmatpush1.msra.mxu0 0.0
      %489 = vmatprep.subr.mxu0 0.0
      %490 = vmatpush1.msra.mxu0 0.0
      %491 = vmatprep.subr.mxu0 0.0
      %492 = vmatpush1.msra.mxu0 0.0
      %493 = vmatprep.subr.mxu0 0.0
      %494 = vmatpush1.msra.mxu0 0.0
      %495 = vmatprep.subr.mxu0 0.0
      %496 = vmatpush1.msra.mxu0 0.0
      %497 = vmatprep.subr.mxu0 0.0
      %498 = vmatpush1.msra.mxu0 0.0
      %499 = vmatprep.subr.mxu0 0.0
      %500 = vmatpush1.msra.mxu0 0.0
      %501 = vmatprep.subr.mxu0 0.0
      %502 = vmatpush1.msra.mxu0 0.0
      %503 = vmatprep.subr.mxu0 0.0
      %504 = vmatpush1.msra.mxu0 0.0
      %505 = vmatprep.subr.mxu0 0.0
      %506 = vmatpush1.msra.mxu0 0.0
      %507 = vmatprep.subr.mxu0 0.0
      %508 = vmatpush1.msra.mxu0 0.0
      %509 = vmatprep.subr.mxu0 0.0
      %510 = vmatpush1.msra.mxu0 %v477
      %511 = vmatprep.subr.mxu0 0.0
      %512 = vmatpush2.msra.mxu0 0.0
      %513 = vmatprep.subr.mxu0 0.0
      %514 = vmatpush2.msra.mxu0 0.0
      %515 = vmatprep.subr.mxu0 0.0
      %516 = vmatpush2.msra.mxu0 0.0
      %517 = vmatprep.subr.mxu0 0.0
      %518 = vmatpush2.msra.mxu0 0.0
      %519 = vmatprep.subr.mxu0 0.0
      %520 = vmatpush2.msra.mxu0 0.0
      %521 = vmatprep.subr.mxu0 0.0
      %522 = vmatpush2.msra.mxu0 0.0
      %523 = vmatprep.subr.mxu0 0.0
      %524 = vmatpush2.msra.mxu0 0.0
      %525 = vmatprep.subr.mxu0 0.0
      %526 = vmatpush2.msra.mxu0 0.0
      %527 = vmatprep.subr.mxu0 0.0
      %528 = vmatpush2.msra.mxu0 0.0
      %529 = vmatprep.subr.mxu0 0.0
      %530 = vmatpush2.msra.mxu0 0.0
      %531 = vmatprep.subr.mxu0 0.0
      %532 = vmatpush2.msra.mxu0 0.0
      %533 = vmatprep.subr.mxu0 0.0
      %534 = vmatpush2.msra.mxu0 0.0
      %535 = vmatprep.subr.mxu0 0.0
      %536 = vmatpush2.msra.mxu0 0.0
      %537 = vmatprep.subr.mxu0 0.0
      %538 = vmatpush2.msra.mxu0 0.0
      %539 = vmatprep.subr.mxu0 0.0
      %540 = vmatpush2.msra.mxu0 0.0
      %541 = vmatprep.subr.mxu0 0.0
      %542 = vmatpush2.msra.mxu0 0.0
      %543 = vmatprep.mubr.f32.mxu0 0.0
      %544 = vmatmul.mubr.f32.gmra.mxu0 %v428
      %v545 = vpop.f32.mrf.mxu0
      %v546 = vadd.f32 0.0, %v545
      %v547 = vpop.f32.mrf.mxu0
      %548 = vmatprep.mubr.f32.mxu0 0.0
      %549 = vmatmul.mubr.f32.gmra.mxu0 %v431
      %v550 = vpop.f32.mrf.mxu0
      %v551 = vadd.f32 0.0, %v550
      %v552 = vpop.f32.mrf.mxu0
      %553 = vmatprep.mubr.f32.mxu0 0.0
      %554 = vmatmul.mubr.f32.gmra.mxu0 %v434
      %v555 = vpop.f32.mrf.mxu0
      %v556 = vadd.f32 0.0, %v555
      %v557 = vpop.f32.mrf.mxu0
      %558 = vmatprep.mubr.f32.mxu0 0.0
      %559 = vmatmul.mubr.f32.gmra.mxu0 %v437
      %v560 = vpop.f32.mrf.mxu0
      %v561 = vadd.f32 0.0, %v560
      %v562 = vpop.f32.mrf.mxu0
      %563 = vmatprep.mubr.f32.mxu0 0.0
      %564 = vmatmul.mubr.f32.gmra.mxu0 %v440
      %v565 = vpop.f32.mrf.mxu0
      %v566 = vadd.f32 0.0, %v565
      %v567 = vpop.f32.mrf.mxu0
      %568 = vmatprep.mubr.f32.mxu0 0.0
      %569 = vmatmul.mubr.f32.gmra.mxu0 %v443
      %v570 = vpop.f32.mrf.mxu0
      %v571 = vadd.f32 0.0, %v570
      %v572 = vpop.f32.mrf.mxu0
      %573 = vmatprep.mubr.f32.mxu0 0.0
      %574 = vmatmul.mubr.f32.gmra.mxu0 %v446
      %v575 = vpop.f32.mrf.mxu0
      %v576 = vadd.f32 0.0, %v575
      %v577 = vpop.f32.mrf.mxu0
      %578 = vmatprep.mubr.f32.mxu0 0.0
      %579 = vmatmul.mubr.f32.gmra.mxu0 %v449
      %v580 = vpop.f32.mrf.mxu0
      %v581 = vadd.f32 0.0, %v580
      %v582 = vpop.f32.mrf.mxu0
      %583 = vmatprep.mubr.f32.mxu0 0.0
      %584 = vmatmul.mubr.f32.gmra.mxu0 %v452
      %v585 = vpop.f32.mrf.mxu0
      %v586 = vadd.f32 0.0, %v585
      %v587 = vpop.f32.mrf.mxu0
      %588 = vmatprep.mubr.f32.mxu0 0.0
      %589 = vmatmul.mubr.f32.gmra.mxu0 %v455
      %v590 = vpop.f32.mrf.mxu0
      %v591 = vadd.f32 0.0, %v590
      %v592 = vpop.f32.mrf.mxu0
      %593 = vmatprep.mubr.f32.mxu0 0.0
      %594 = vmatmul.mubr.f32.gmra.mxu0 %v458
      %v595 = vpop.f32.mrf.mxu0
      %v596 = vadd.f32 0.0, %v595
      %v597 = vpop.f32.mrf.mxu0
      %598 = vmatprep.mubr.f32.mxu0 0.0
      %599 = vmatmul.mubr.f32.gmra.mxu0 %v461
      %v600 = vpop.f32.mrf.mxu0
      %v601 = vadd.f32 0.0, %v600
      %v602 = vpop.f32.mrf.mxu0
      %603 = vmatprep.mubr.f32.mxu0 0.0
      %604 = vmatmul.mubr.f32.gmra.mxu0 %v464
      %v605 = vpop.f32.mrf.mxu0
      %v606 = vadd.f32 0.0, %v605
      %v607 = vpop.f32.mrf.mxu0
      %608 = vmatprep.mubr.f32.mxu0 0.0
      %609 = vmatmul.mubr.f32.gmra.mxu0 %v467
      %v610 = vpop.f32.mrf.mxu0
      %v611 = vadd.f32 0.0, %v610
      %v612 = vpop.f32.mrf.mxu0
      %613 = vmatprep.mubr.f32.mxu0 0.0
      %614 = vmatmul.mubr.f32.gmra.mxu0 %v470
      %v615 = vpop.f32.mrf.mxu0
      %v616 = vadd.f32 0.0, %v615
      %v617 = vpop.f32.mrf.mxu0
      %618 = vmatprep.mubr.f32.mxu0 0.0
      %619 = vmatmul.mubr.f32.gmra.mxu0 %v473
      %v620 = vpop.f32.mrf.mxu0
      %v621 = vadd.f32 0.0, %v620
      %v622 = vpop.f32.mrf.mxu0
      %623 = vdwg.mxu0
      %v625 = vlaneseq
      %v626 = vshrl.u32 %v625, 7
      %v627 = vsub.s32 0, %v626
      %v628 = vrot.slane %v424, %v627
      %v630 = vsub.f32 %v628, %v546
      %v631 = vsub.f32 %v628, %v551
      %v632 = vsub.f32 %v628, %v556
      %v633 = vsub.f32 %v628, %v561
      %v634 = vsub.f32 %v628, %v566
      %v635 = vsub.f32 %v628, %v571
      %v636 = vsub.f32 %v628, %v576
      %v637 = vsub.f32 %v628, %v581
      %v638 = vsub.f32 %v628, %v586
      %v639 = vsub.f32 %v628, %v591
      %v640 = vsub.f32 %v628, %v596
      %v641 = vsub.f32 %v628, %v601
      %v642 = vsub.f32 %v628, %v606
      %v643 = vsub.f32 %v628, %v611
      %v644 = vsub.f32 %v628, %v616
      %v645 = vsub.f32 %v628, %v621
      %646 = vset.pattern.permute.xlu0 0
      %647 = vperm.xlu0 %646, %v407
      %v648 = vpop.permute.xlu0 %647
      %649 = vset.pattern.permute.xlu0 0
      %650 = vperm.xlu0 %649, %v408
      %v651 = vpop.permute.xlu0 %650
      %652 = vset.pattern.permute.xlu0 0
      %653 = vperm.xlu0 %652, %v409
      %v654 = vpop.permute.xlu0 %653
      %655 = vset.pattern.permute.xlu0 0
      %656 = vperm.xlu0 %655, %v410
      %v657 = vpop.permute.xlu0 %656
      %658 = vset.pattern.permute.xlu0 0
      %659 = vperm.xlu0 %658, %v411
      %v660 = vpop.permute.xlu0 %659
      %661 = vset.pattern.permute.xlu0 0
      %662 = vperm.xlu0 %661, %v412
      %v663 = vpop.permute.xlu0 %662
      %664 = vset.pattern.permute.xlu0 0
      %665 = vperm.xlu0 %664, %v413
      %v666 = vpop.permute.xlu0 %665
      %667 = vset.pattern.permute.xlu0 0
      %668 = vperm.xlu0 %667, %v414
      %v669 = vpop.permute.xlu0 %668
      %670 = vset.pattern.permute.xlu0 0
      %671 = vperm.xlu0 %670, %v415
      %v672 = vpop.permute.xlu0 %671
      %673 = vset.pattern.permute.xlu0 0
      %674 = vperm.xlu0 %673, %v416
      %v675 = vpop.permute.xlu0 %674
      %676 = vset.pattern.permute.xlu0 0
      %677 = vperm.xlu0 %676, %v417
      %v678 = vpop.permute.xlu0 %677
      %679 = vset.pattern.permute.xlu0 0
      %680 = vperm.xlu0 %679, %v418
      %v681 = vpop.permute.xlu0 %680
      %682 = vset.pattern.permute.xlu0 0
      %683 = vperm.xlu0 %682, %v419
      %v684 = vpop.permute.xlu0 %683
      %685 = vset.pattern.permute.xlu0 0
      %686 = vperm.xlu0 %685, %v420
      %v687 = vpop.permute.xlu0 %686
      %688 = vset.pattern.permute.xlu0 0
      %689 = vperm.xlu0 %688, %v421
      %v690 = vpop.permute.xlu0 %689
      %691 = vset.pattern.permute.xlu0 0
      %692 = vperm.xlu0 %691, %v422
      %v693 = vpop.permute.xlu0 %692
      %v694 = vlaneseq
      %v695 = vshrl.u32 %v694, 7
      %v696 = vsub.s32 0, %v695
      %v697 = vrot.slane %v425, %v696
      %vm698 = vcmp.eq.s32.totalorder %v648, %v697
      %vm699 = vcmp.eq.s32.totalorder %v651, %v697
      %vm700 = vcmp.eq.s32.totalorder %v654, %v697
      %vm701 = vcmp.eq.s32.totalorder %v657, %v697
      %vm702 = vcmp.eq.s32.totalorder %v660, %v697
      %vm703 = vcmp.eq.s32.totalorder %v663, %v697
      %vm704 = vcmp.eq.s32.totalorder %v666, %v697
      %vm705 = vcmp.eq.s32.totalorder %v669, %v697
      %vm706 = vcmp.eq.s32.totalorder %v672, %v697
      %vm707 = vcmp.eq.s32.totalorder %v675, %v697
      %vm708 = vcmp.eq.s32.totalorder %v678, %v697
      %vm709 = vcmp.eq.s32.totalorder %v681, %v697
      %vm710 = vcmp.eq.s32.totalorder %v684, %v697
      %vm711 = vcmp.eq.s32.totalorder %v687, %v697
      %vm712 = vcmp.eq.s32.totalorder %v690, %v697
      %vm713 = vcmp.eq.s32.totalorder %v693, %v697
      %v714 = vsel %vm698, %v630, inf
      %v715 = vsel %vm699, %v631, inf
      %v716 = vsel %vm700, %v632, inf
      %v717 = vsel %vm701, %v633, inf
      %v718 = vsel %vm702, %v634, inf
      %v719 = vsel %vm703, %v635, inf
      %v720 = vsel %vm704, %v636, inf
      %v721 = vsel %vm705, %v637, inf
      %v722 = vsel %vm706, %v638, inf
      %v723 = vsel %vm707, %v639, inf
      %v724 = vsel %vm708, %v640, inf
      %v725 = vsel %vm709, %v641, inf
      %v726 = vsel %vm710, %v642, inf
      %v727 = vsel %vm711, %v643, inf
      %v728 = vsel %vm712, %v644, inf
      %v729 = vsel %vm713, %v645, inf
      %v730 = vld [vmem:[#allocation2] sm:$0xff]
      %v731 = vld [vmem:[#allocation2 + $0x8] sm:$0xff]
      %v732 = vld [vmem:[#allocation2 + $0x10] sm:$0xff]
      %v733 = vld [vmem:[#allocation2 + $0x18] sm:$0xff]
      %v734 = vld [vmem:[#allocation2 + $0x20] sm:$0xff]
      %v735 = vld [vmem:[#allocation2 + $0x28] sm:$0xff]
      %v736 = vld [vmem:[#allocation2 + $0x30] sm:$0xff]
      %v737 = vld [vmem:[#allocation2 + $0x38] sm:$0xff]
      %v738 = vld [vmem:[#allocation2 + $0x40] sm:$0xff]
      %v739 = vld [vmem:[#allocation2 + $0x48] sm:$0xff]
      %v740 = vld [vmem:[#allocation2 + $0x50] sm:$0xff]
      %v741 = vld [vmem:[#allocation2 + $0x58] sm:$0xff]
      %v742 = vld [vmem:[#allocation2 + $0x60] sm:$0xff]
      %v743 = vld [vmem:[#allocation2 + $0x68] sm:$0xff]
      %v744 = vld [vmem:[#allocation2 + $0x70] sm:$0xff]
      %v745 = vld [vmem:[#allocation2 + $0x78] sm:$0xff]
      %v746 = vmin.f32 %v730, %v714
      %v747 = vmin.f32 %v731, %v715
      %v748 = vmin.f32 %v732, %v716
      %v749 = vmin.f32 %v733, %v717
      %v750 = vmin.f32 %v734, %v718
      %v751 = vmin.f32 %v735, %v719
      %v752 = vmin.f32 %v736, %v720
      %v753 = vmin.f32 %v737, %v721
      %v754 = vmin.f32 %v738, %v722
      %v755 = vmin.f32 %v739, %v723
      %v756 = vmin.f32 %v740, %v724
      %v757 = vmin.f32 %v741, %v725
      %v758 = vmin.f32 %v742, %v726
      %v759 = vmin.f32 %v743, %v727
      %v760 = vmin.f32 %v744, %v728
      %v761 = vmin.f32 %v745, %v729
      %762 = vst [vmem:[#allocation2] sm:$0xff] %v746
      %763 = vst [vmem:[#allocation2 + $0x8] sm:$0xff] %v747
      %764 = vst [vmem:[#allocation2 + $0x10] sm:$0xff] %v748
      %765 = vst [vmem:[#allocation2 + $0x18] sm:$0xff] %v749
      %766 = vst [vmem:[#allocation2 + $0x20] sm:$0xff] %v750
      %767 = vst [vmem:[#allocation2 + $0x28] sm:$0xff] %v751
      %768 = vst [vmem:[#allocation2 + $0x30] sm:$0xff] %v752
      %769 = vst [vmem:[#allocation2 + $0x38] sm:$0xff] %v753
      %770 = vst [vmem:[#allocation2 + $0x40] sm:$0xff] %v754
      %771 = vst [vmem:[#allocation2 + $0x48] sm:$0xff] %v755
      %772 = vst [vmem:[#allocation2 + $0x50] sm:$0xff] %v756
      %773 = vst [vmem:[#allocation2 + $0x58] sm:$0xff] %v757
      %774 = vst [vmem:[#allocation2 + $0x60] sm:$0xff] %v758
      %775 = vst [vmem:[#allocation2 + $0x68] sm:$0xff] %v759
      %776 = vst [vmem:[#allocation2 + $0x70] sm:$0xff] %v760
      %777 = vst [vmem:[#allocation2 + $0x78] sm:$0xff] %v761
      %v778 = vld [vmem:[%s353 + $0x4] sm:$0x7]
      %v779 = vld [vmem:[%s358 + $0x1] sm:$0x1]
      %v780 = vld [vmem:[%s363 + $0x1] sm:$0x1]
      %v782 = vsel %vm475, %v778, 0
      %784 = vmatprep.subr.mxu0 0.0
      %785 = vmatpush1.msra.mxu0 0.0
      %786 = vmatprep.subr.mxu0 0.0
      %787 = vmatpush1.msra.mxu0 0.0
      %788 = vmatprep.subr.mxu0 0.0
      %789 = vmatpush1.msra.mxu0 0.0
      %790 = vmatprep.subr.mxu0 0.0
      %791 = vmatpush1.msra.mxu0 0.0
      %792 = vmatprep.subr.mxu0 0.0
      %793 = vmatpush1.msra.mxu0 0.0
      %794 = vmatprep.subr.mxu0 0.0
      %795 = vmatpush1.msra.mxu0 0.0
      %796 = vmatprep.subr.mxu0 0.0
      %797 = vmatpush1.msra.mxu0 0.0
      %798 = vmatprep.subr.mxu0 0.0
      %799 = vmatpush1.msra.mxu0 0.0
      %800 = vmatprep.subr.mxu0 0.0
      %801 = vmatpush1.msra.mxu0 0.0
      %802 = vmatprep.subr.mxu0 0.0
      %803 = vmatpush1.msra.mxu0 0.0
      %804 = vmatprep.subr.mxu0 0.0
      %805 = vmatpush1.msra.mxu0 0.0
      %806 = vmatprep.subr.mxu0 0.0
      %807 = vmatpush1.msra.mxu0 0.0
      %808 = vmatprep.subr.mxu0 0.0
      %809 = vmatpush1.msra.mxu0 0.0
      %810 = vmatprep.subr.mxu0 0.0
      %811 = vmatpush1.msra.mxu0 0.0
      %812 = vmatprep.subr.mxu0 0.0
      %813 = vmatpush1.msra.mxu0 0.0
      %814 = vmatprep.subr.mxu0 0.0
      %815 = vmatpush1.msra.mxu0 %v782
      %816 = vmatprep.subr.mxu0 0.0
      %817 = vmatpush2.msra.mxu0 0.0
      %818 = vmatprep.subr.mxu0 0.0
      %819 = vmatpush2.msra.mxu0 0.0
      %820 = vmatprep.subr.mxu0 0.0
      %821 = vmatpush2.msra.mxu0 0.0
      %822 = vmatprep.subr.mxu0 0.0
      %823 = vmatpush2.msra.mxu0 0.0
      %824 = vmatprep.subr.mxu0 0.0
      %825 = vmatpush2.msra.mxu0 0.0
      %826 = vmatprep.subr.mxu0 0.0
      %827 = vmatpush2.msra.mxu0 0.0
      %828 = vmatprep.subr.mxu0 0.0
      %829 = vmatpush2.msra.mxu0 0.0
      %830 = vmatprep.subr.mxu0 0.0
      %831 = vmatpush2.msra.mxu0 0.0
      %832 = vmatprep.subr.mxu0 0.0
      %833 = vmatpush2.msra.mxu0 0.0
      %834 = vmatprep.subr.mxu0 0.0
      %835 = vmatpush2.msra.mxu0 0.0
      %836 = vmatprep.subr.mxu0 0.0
      %837 = vmatpush2.msra.mxu0 0.0
      %838 = vmatprep.subr.mxu0 0.0
      %839 = vmatpush2.msra.mxu0 0.0
      %840 = vmatprep.subr.mxu0 0.0
      %841 = vmatpush2.msra.mxu0 0.0
      %842 = vmatprep.subr.mxu0 0.0
      %843 = vmatpush2.msra.mxu0 0.0
      %844 = vmatprep.subr.mxu0 0.0
      %845 = vmatpush2.msra.mxu0 0.0
      %846 = vmatprep.subr.mxu0 0.0
      %847 = vmatpush2.msra.mxu0 0.0
      %848 = vmatprep.mubr.f32.mxu0 0.0
      %849 = vmatmul.mubr.f32.gmra.mxu0 %v428
      %v850 = vpop.f32.mrf.mxu0
      %v851 = vadd.f32 0.0, %v850
      %v852 = vpop.f32.mrf.mxu0
      %853 = vmatprep.mubr.f32.mxu0 0.0
      %854 = vmatmul.mubr.f32.gmra.mxu0 %v431
      %v855 = vpop.f32.mrf.mxu0
      %v856 = vadd.f32 0.0, %v855
      %v857 = vpop.f32.mrf.mxu0
      %858 = vmatprep.mubr.f32.mxu0 0.0
      %859 = vmatmul.mubr.f32.gmra.mxu0 %v434
      %v860 = vpop.f32.mrf.mxu0
      %v861 = vadd.f32 0.0, %v860
      %v862 = vpop.f32.mrf.mxu0
      %863 = vmatprep.mubr.f32.mxu0 0.0
      %864 = vmatmul.mubr.f32.gmra.mxu0 %v437
      %v865 = vpop.f32.mrf.mxu0
      %v866 = vadd.f32 0.0, %v865
      %v867 = vpop.f32.mrf.mxu0
      %868 = vmatprep.mubr.f32.mxu0 0.0
      %869 = vmatmul.mubr.f32.gmra.mxu0 %v440
      %v870 = vpop.f32.mrf.mxu0
      %v871 = vadd.f32 0.0, %v870
      %v872 = vpop.f32.mrf.mxu0
      %873 = vmatprep.mubr.f32.mxu0 0.0
      %874 = vmatmul.mubr.f32.gmra.mxu0 %v443
      %v875 = vpop.f32.mrf.mxu0
      %v876 = vadd.f32 0.0, %v875
      %v877 = vpop.f32.mrf.mxu0
      %878 = vmatprep.mubr.f32.mxu0 0.0
      %879 = vmatmul.mubr.f32.gmra.mxu0 %v446
      %v880 = vpop.f32.mrf.mxu0
      %v881 = vadd.f32 0.0, %v880
      %v882 = vpop.f32.mrf.mxu0
      %883 = vmatprep.mubr.f32.mxu0 0.0
      %884 = vmatmul.mubr.f32.gmra.mxu0 %v449
      %v885 = vpop.f32.mrf.mxu0
      %v886 = vadd.f32 0.0, %v885
      %v887 = vpop.f32.mrf.mxu0
      %888 = vmatprep.mubr.f32.mxu0 0.0
      %889 = vmatmul.mubr.f32.gmra.mxu0 %v452
      %v890 = vpop.f32.mrf.mxu0
      %v891 = vadd.f32 0.0, %v890
      %v892 = vpop.f32.mrf.mxu0
      %893 = vmatprep.mubr.f32.mxu0 0.0
      %894 = vmatmul.mubr.f32.gmra.mxu0 %v455
      %v895 = vpop.f32.mrf.mxu0
      %v896 = vadd.f32 0.0, %v895
      %v897 = vpop.f32.mrf.mxu0
      %898 = vmatprep.mubr.f32.mxu0 0.0
      %899 = vmatmul.mubr.f32.gmra.mxu0 %v458
      %v900 = vpop.f32.mrf.mxu0
      %v901 = vadd.f32 0.0, %v900
      %v902 = vpop.f32.mrf.mxu0
      %903 = vmatprep.mubr.f32.mxu0 0.0
      %904 = vmatmul.mubr.f32.gmra.mxu0 %v461
      %v905 = vpop.f32.mrf.mxu0
      %v906 = vadd.f32 0.0, %v905
      %v907 = vpop.f32.mrf.mxu0
      %908 = vmatprep.mubr.f32.mxu0 0.0
      %909 = vmatmul.mubr.f32.gmra.mxu0 %v464
      %v910 = vpop.f32.mrf.mxu0
      %v911 = vadd.f32 0.0, %v910
      %v912 = vpop.f32.mrf.mxu0
      %913 = vmatprep.mubr.f32.mxu0 0.0
      %914 = vmatmul.mubr.f32.gmra.mxu0 %v467
      %v915 = vpop.f32.mrf.mxu0
      %v916 = vadd.f32 0.0, %v915
      %v917 = vpop.f32.mrf.mxu0
      %918 = vmatprep.mubr.f32.mxu0 0.0
      %919 = vmatmul.mubr.f32.gmra.mxu0 %v470
      %v920 = vpop.f32.mrf.mxu0
      %v921 = vadd.f32 0.0, %v920
      %v922 = vpop.f32.mrf.mxu0
      %923 = vmatprep.mubr.f32.mxu0 0.0
      %924 = vmatmul.mubr.f32.gmra.mxu0 %v473
      %v925 = vpop.f32.mrf.mxu0
      %v926 = vadd.f32 0.0, %v925
      %v927 = vpop.f32.mrf.mxu0
      %928 = vdwg.mxu0
      %v930 = vlaneseq
      %v931 = vshrl.u32 %v930, 7
      %v932 = vsub.s32 0, %v931
      %v933 = vrot.slane %v779, %v932
      %v935 = vsub.f32 %v933, %v851
      %v936 = vsub.f32 %v933, %v856
      %v937 = vsub.f32 %v933, %v861
      %v938 = vsub.f32 %v933, %v866
      %v939 = vsub.f32 %v933, %v871
      %v940 = vsub.f32 %v933, %v876
      %v941 = vsub.f32 %v933, %v881
      %v942 = vsub.f32 %v933, %v886
      %v943 = vsub.f32 %v933, %v891
      %v944 = vsub.f32 %v933, %v896
      %v945 = vsub.f32 %v933, %v901
      %v946 = vsub.f32 %v933, %v906
      %v947 = vsub.f32 %v933, %v911
      %v948 = vsub.f32 %v933, %v916
      %v949 = vsub.f32 %v933, %v921
      %v950 = vsub.f32 %v933, %v926
      %v951 = vlaneseq
      %v952 = vshrl.u32 %v951, 7
      %v953 = vsub.s32 0, %v952
      %v954 = vrot.slane %v780, %v953
      %vm955 = vcmp.eq.s32.totalorder %v648, %v954
      %vm956 = vcmp.eq.s32.totalorder %v651, %v954
      %vm957 = vcmp.eq.s32.totalorder %v654, %v954
      %vm958 = vcmp.eq.s32.totalorder %v657, %v954
      %vm959 = vcmp.eq.s32.totalorder %v660, %v954
      %vm960 = vcmp.eq.s32.totalorder %v663, %v954
      %vm961 = vcmp.eq.s32.totalorder %v666, %v954
      %vm962 = vcmp.eq.s32.totalorder %v669, %v954
      %vm963 = vcmp.eq.s32.totalorder %v672, %v954
      %vm964 = vcmp.eq.s32.totalorder %v675, %v954
      %vm965 = vcmp.eq.s32.totalorder %v678, %v954
      %vm966 = vcmp.eq.s32.totalorder %v681, %v954
      %vm967 = vcmp.eq.s32.totalorder %v684, %v954
      %vm968 = vcmp.eq.s32.totalorder %v687, %v954
      %vm969 = vcmp.eq.s32.totalorder %v690, %v954
      %vm970 = vcmp.eq.s32.totalorder %v693, %v954
      %v971 = vsel %vm955, %v935, inf
      %v972 = vsel %vm956, %v936, inf
      %v973 = vsel %vm957, %v937, inf
      %v974 = vsel %vm958, %v938, inf
      %v975 = vsel %vm959, %v939, inf
      %v976 = vsel %vm960, %v940, inf
      %v977 = vsel %vm961, %v941, inf
      %v978 = vsel %vm962, %v942, inf
      %v979 = vsel %vm963, %v943, inf
      %v980 = vsel %vm964, %v944, inf
      %v981 = vsel %vm965, %v945, inf
      %v982 = vsel %vm966, %v946, inf
      %v983 = vsel %vm967, %v947, inf
      %v984 = vsel %vm968, %v948, inf
      %v985 = vsel %vm969, %v949, inf
      %v986 = vsel %vm970, %v950, inf
      %v987 = vld [vmem:[#allocation2] sm:$0xff]
      %v988 = vld [vmem:[#allocation2 + $0x8] sm:$0xff]
      %v989 = vld [vmem:[#allocation2 + $0x10] sm:$0xff]
      %v990 = vld [vmem:[#allocation2 + $0x18] sm:$0xff]
      %v991 = vld [vmem:[#allocation2 + $0x20] sm:$0xff]
      %v992 = vld [vmem:[#allocation2 + $0x28] sm:$0xff]
      %v993 = vld [vmem:[#allocation2 + $0x30] sm:$0xff]
      %v994 = vld [vmem:[#allocation2 + $0x38] sm:$0xff]
      %v995 = vld [vmem:[#allocation2 + $0x40] sm:$0xff]
      %v996 = vld [vmem:[#allocation2 + $0x48] sm:$0xff]
      %v997 = vld [vmem:[#allocation2 + $0x50] sm:$0xff]
      %v998 = vld [vmem:[#allocation2 + $0x58] sm:$0xff]
      %v999 = vld [vmem:[#allocation2 + $0x60] sm:$0xff]
      %v1000 = vld [vmem:[#allocation2 + $0x68] sm:$0xff]
      %v1001 = vld [vmem:[#allocation2 + $0x70] sm:$0xff]
      %v1002 = vld [vmem:[#allocation2 + $0x78] sm:$0xff]
      %v1003 = vmin.f32 %v987, %v971
      %v1004 = vmin.f32 %v988, %v972
      %v1005 = vmin.f32 %v989, %v973
      %v1006 = vmin.f32 %v990, %v974
      %v1007 = vmin.f32 %v991, %v975
      %v1008 = vmin.f32 %v992, %v976
      %v1009 = vmin.f32 %v993, %v977
      %v1010 = vmin.f32 %v994, %v978
      %v1011 = vmin.f32 %v995, %v979
      %v1012 = vmin.f32 %v996, %v980
      %v1013 = vmin.f32 %v997, %v981
      %v1014 = vmin.f32 %v998, %v982
      %v1015 = vmin.f32 %v999, %v983
      %v1016 = vmin.f32 %v1000, %v984
      %v1017 = vmin.f32 %v1001, %v985
      %v1018 = vmin.f32 %v1002, %v986
      %1019 = vst [vmem:[#allocation2] sm:$0xff] %v1003
      %1020 = vst [vmem:[#allocation2 + $0x8] sm:$0xff] %v1004
      %1021 = vst [vmem:[#allocation2 + $0x10] sm:$0xff] %v1005
      %1022 = vst [vmem:[#allocation2 + $0x18] sm:$0xff] %v1006
      %1023 = vst [vmem:[#allocation2 + $0x20] sm:$0xff] %v1007
      %1024 = vst [vmem:[#allocation2 + $0x28] sm:$0xff] %v1008
      %1025 = vst [vmem:[#allocation2 + $0x30] sm:$0xff] %v1009
      %1026 = vst [vmem:[#allocation2 + $0x38] sm:$0xff] %v1010
      %1027 = vst [vmem:[#allocation2 + $0x40] sm:$0xff] %v1011
      %1028 = vst [vmem:[#allocation2 + $0x48] sm:$0xff] %v1012
      %1029 = vst [vmem:[#allocation2 + $0x50] sm:$0xff] %v1013
      %1030 = vst [vmem:[#allocation2 + $0x58] sm:$0xff] %v1014
      %1031 = vst [vmem:[#allocation2 + $0x60] sm:$0xff] %v1015
      %1032 = vst [vmem:[#allocation2 + $0x68] sm:$0xff] %v1016
      %1033 = vst [vmem:[#allocation2 + $0x70] sm:$0xff] %v1017
      %1034 = vst [vmem:[#allocation2 + $0x78] sm:$0xff] %v1018
      // Predicated region
      $region49: #{tpu_custom_call.1} parent=43 // pred_check
        %p1035 = pneg %p371
      $region50: #{tpu_custom_call.1} parent=43 // pred_check_branch
        %1037 = sbr.rel (%p1035) target = $region52
      $region51: #{tpu_custom_call.1} parent=43 // pred_region
        %v1038 = vld [vmem:[#allocation2] sm:$0xff]
        %v1039 = vld [vmem:[#allocation2 + $0x8] sm:$0xff]
        %v1040 = vld [vmem:[#allocation2 + $0x10] sm:$0xff]
        %v1041 = vld [vmem:[#allocation2 + $0x18] sm:$0xff]
        %v1042 = vld [vmem:[#allocation2 + $0x20] sm:$0xff]
        %v1043 = vld [vmem:[#allocation2 + $0x28] sm:$0xff]
        %v1044 = vld [vmem:[#allocation2 + $0x30] sm:$0xff]
        %v1045 = vld [vmem:[#allocation2 + $0x38] sm:$0xff]
        %v1046 = vld [vmem:[#allocation2 + $0x40] sm:$0xff]
        %v1047 = vld [vmem:[#allocation2 + $0x48] sm:$0xff]
        %v1048 = vld [vmem:[#allocation2 + $0x50] sm:$0xff]
        %v1049 = vld [vmem:[#allocation2 + $0x58] sm:$0xff]
        %v1050 = vld [vmem:[#allocation2 + $0x60] sm:$0xff]
        %v1051 = vld [vmem:[#allocation2 + $0x68] sm:$0xff]
        %v1052 = vld [vmem:[#allocation2 + $0x70] sm:$0xff]
        %v1053 = vld [vmem:[#allocation2 + $0x78] sm:$0xff]
        %1054 = vmin.xlane.f32.xlu0 %v1038
        %v1055 = vpop.xlane.xlu0 %1054
        %1056 = vmin.xlane.f32.xlu0 %v1039
        %v1057 = vpop.xlane.xlu0 %1056
        %1058 = vmin.xlane.f32.xlu0 %v1040
        %v1059 = vpop.xlane.xlu0 %1058
        %1060 = vmin.xlane.f32.xlu0 %v1041
        %v1061 = vpop.xlane.xlu0 %1060
        %1062 = vmin.xlane.f32.xlu0 %v1042
        %v1063 = vpop.xlane.xlu0 %1062
        %1064 = vmin.xlane.f32.xlu0 %v1043
        %v1065 = vpop.xlane.xlu0 %1064
        %1066 = vmin.xlane.f32.xlu0 %v1044
        %v1067 = vpop.xlane.xlu0 %1066
        %1068 = vmin.xlane.f32.xlu0 %v1045
        %v1069 = vpop.xlane.xlu0 %1068
        %1070 = vmin.xlane.f32.xlu0 %v1046
        %v1071 = vpop.xlane.xlu0 %1070
        %1072 = vmin.xlane.f32.xlu0 %v1047
        %v1073 = vpop.xlane.xlu0 %1072
        %1074 = vmin.xlane.f32.xlu0 %v1048
        %v1075 = vpop.xlane.xlu0 %1074
        %1076 = vmin.xlane.f32.xlu0 %v1049
        %v1077 = vpop.xlane.xlu0 %1076
        %1078 = vmin.xlane.f32.xlu0 %v1050
        %v1079 = vpop.xlane.xlu0 %1078
        %1080 = vmin.xlane.f32.xlu0 %v1051
        %v1081 = vpop.xlane.xlu0 %1080
        %1082 = vmin.xlane.f32.xlu0 %v1052
        %v1083 = vpop.xlane.xlu0 %1082
        %1084 = vmin.xlane.f32.xlu0 %v1053
        %v1085 = vpop.xlane.xlu0 %1084
        %v1086 = vld [vmem:[%s341] sm:$0xff]
        %v1087 = vld [vmem:[%s341 + $0x8] sm:$0xff]
        %v1088 = vld [vmem:[%s341 + $0x10] sm:$0xff]
        %v1089 = vld [vmem:[%s341 + $0x18] sm:$0xff]
        %v1090 = vld [vmem:[%s341 + $0x20] sm:$0xff]
        %v1091 = vld [vmem:[%s341 + $0x28] sm:$0xff]
        %v1092 = vld [vmem:[%s341 + $0x30] sm:$0xff]
        %v1093 = vld [vmem:[%s341 + $0x38] sm:$0xff]
        %v1094 = vld [vmem:[%s341 + $0x40] sm:$0xff]
        %v1095 = vld [vmem:[%s341 + $0x48] sm:$0xff]
        %v1096 = vld [vmem:[%s341 + $0x50] sm:$0xff]
        %v1097 = vld [vmem:[%s341 + $0x58] sm:$0xff]
        %v1098 = vld [vmem:[%s341 + $0x60] sm:$0xff]
        %v1099 = vld [vmem:[%s341 + $0x68] sm:$0xff]
        %v1100 = vld [vmem:[%s341 + $0x70] sm:$0xff]
        %v1101 = vld [vmem:[%s341 + $0x78] sm:$0xff]
        %v1102 = vmul.f32 %v1055, 2.0
        %v1103 = vmul.f32 %v1057, 2.0
        %v1104 = vmul.f32 %v1059, 2.0
        %v1105 = vmul.f32 %v1061, 2.0
        %v1106 = vmul.f32 %v1063, 2.0
        %v1107 = vmul.f32 %v1065, 2.0
        %v1108 = vmul.f32 %v1067, 2.0
        %v1109 = vmul.f32 %v1069, 2.0
        %v1110 = vmul.f32 %v1071, 2.0
        %v1111 = vmul.f32 %v1073, 2.0
        %v1112 = vmul.f32 %v1075, 2.0
        %v1113 = vmul.f32 %v1077, 2.0
        %v1114 = vmul.f32 %v1079, 2.0
        %v1115 = vmul.f32 %v1081, 2.0
        %v1116 = vmul.f32 %v1083, 2.0
        %v1117 = vmul.f32 %v1085, 2.0
        %v1118 = vadd.f32 %v1086, %v1102
        %v1119 = vadd.f32 %v1087, %v1103
        %v1120 = vadd.f32 %v1088, %v1104
        %v1121 = vadd.f32 %v1089, %v1105
        %v1122 = vadd.f32 %v1090, %v1106
        %v1123 = vadd.f32 %v1091, %v1107
        %v1124 = vadd.f32 %v1092, %v1108
        %v1125 = vadd.f32 %v1093, %v1109
        %v1126 = vadd.f32 %v1094, %v1110
        %v1127 = vadd.f32 %v1095, %v1111
        %v1128 = vadd.f32 %v1096, %v1112
        %v1129 = vadd.f32 %v1097, %v1113
        %v1130 = vadd.f32 %v1098, %v1114
        %v1131 = vadd.f32 %v1099, %v1115
        %v1132 = vadd.f32 %v1100, %v1116
        %v1133 = vadd.f32 %v1101, %v1117
        %v1134 = vmax.f32 %v1118, 0.0
        %v1135 = vmax.f32 %v1119, 0.0
        %v1136 = vmax.f32 %v1120, 0.0
        %v1137 = vmax.f32 %v1121, 0.0
        %v1138 = vmax.f32 %v1122, 0.0
        %v1139 = vmax.f32 %v1123, 0.0
        %v1140 = vmax.f32 %v1124, 0.0
        %v1141 = vmax.f32 %v1125, 0.0
        %v1142 = vmax.f32 %v1126, 0.0
        %v1143 = vmax.f32 %v1127, 0.0
        %v1144 = vmax.f32 %v1128, 0.0
        %v1145 = vmax.f32 %v1129, 0.0
        %v1146 = vmax.f32 %v1130, 0.0
        %v1147 = vmax.f32 %v1131, 0.0
        %v1148 = vmax.f32 %v1132, 0.0
        %v1149 = vmax.f32 %v1133, 0.0
        %vm1150 = vcmask 7168
        %1151 = vst.msk [vmem:[%s369] sm:$0xff] %vm1150, %v1134
        %1152 = vst.msk [vmem:[%s369 + $0x8] sm:$0xff] %vm1150, %v1135
        %1153 = vst.msk [vmem:[%s369 + $0x10] sm:$0xff] %vm1150, %v1136
        %1154 = vst.msk [vmem:[%s369 + $0x18] sm:$0xff] %vm1150, %v1137
        %1155 = vst.msk [vmem:[%s369 + $0x20] sm:$0xff] %vm1150, %v1138
        %1156 = vst.msk [vmem:[%s369 + $0x28] sm:$0xff] %vm1150, %v1139
        %1157 = vst.msk [vmem:[%s369 + $0x30] sm:$0xff] %vm1150, %v1140
        %1158 = vst.msk [vmem:[%s369 + $0x38] sm:$0xff] %vm1150, %v1141
        %1159 = vst.msk [vmem:[%s369 + $0x40] sm:$0xff] %vm1150, %v1142
        %1160 = vst.msk [vmem:[%s369 + $0x48] sm:$0xff] %vm1150, %v1143
        %1161 = vst.msk [vmem:[%s369 + $0x50] sm:$0xff] %vm1150, %v1144
        %1162 = vst.msk [vmem:[%s369 + $0x58] sm:$0xff] %vm1150, %v1145
        %1163 = vst.msk [vmem:[%s369 + $0x60] sm:$0xff] %vm1150, %v1146
        %1164 = vst.msk [vmem:[%s369 + $0x68] sm:$0xff] %vm1150, %v1147
        %1165 = vst.msk [vmem:[%s369 + $0x70] sm:$0xff] %vm1150, %v1148
        %1166 = vst.msk [vmem:[%s369 + $0x78] sm:$0xff] %vm1150, %v1149
      $region52: #{tpu_custom_call.1} parent=43 // pred_fallthru
        _
      %s1167 = smul.u32 16, %s21
      %p1168 = scmp.lt.s32.totalorder %s1167, 31
      %s1169 = scalar_select %p1168, %s1167, 31
      %s1170 = smul.addr %s1169, 8
      %s1171 = scalar_lea.vmem %s6, %s1170
      // Predicated region
      $region53: #{tpu_custom_call.1} parent=43 // pred_check
        %p1172 = pneg %p203
      $region54: #{tpu_custom_call.1} parent=43 // pred_check_branch
        %1174 = sbr.rel (%p1172) target = $region56
      $region55: #{tpu_custom_call.1} parent=43 // pred_region
        %s1175 = smul.u32 16, %s21
      $region56: #{tpu_custom_call.1} parent=43 // pred_fallthru
        _
    $region44: #{tpu_custom_call.1} parent=5 // pred_fallthru
      _
    %p1176 = scmp.le.s32.totalorder 2, %s12
    // Predicated region
    $region57: #{tpu_custom_call.1} parent=5 // pred_check
      %p1177 = pneg %p1176
    $region58: #{tpu_custom_call.1} parent=5 // pred_check_branch
      %1179 = sbr.rel (%p1177) target = $region60
    $region59: #{tpu_custom_call.1} parent=5 // pred_region
      %s1180 = ssub.s32 %s12, 2
      // Predicated region
      $region61: #{tpu_custom_call.1} parent=59 // pred_check
        %p1181 = pneg %p209
      $region62: #{tpu_custom_call.1} parent=59 // pred_check_branch
        %1183 = sbr.rel (%p1181) target = $region64
      $region63: #{tpu_custom_call.1} parent=59 // pred_region
        %s1184 = smul.u32 16, %s23
        %p1185 = scmp.lt.s32.totalorder %s1184, 31
        %s1186 = scalar_select %p1185, %s1184, 31
        %s1187 = smul.addr %s1186, 8
        %s1188 = scalar_lea.vmem %s6, %s1187
      $region64: #{tpu_custom_call.1} parent=59 // pred_fallthru
        _
    $region60: #{tpu_custom_call.1} parent=5 // pred_fallthru
      _
  $region6: #{tpu_custom_call.1} parent=0 // loop_footer
    %s16 = sadd.s32 1, %s12
  $region7: #{tpu_custom_call.1} parent=0 // loop_footer_branch
    %11 = sbr.rel target = $region3
  $region8: #{tpu_custom_call.1} parent=0 // loop_exit
    _

</llo_original>
